<compile_context>
chip_gen: v7x
topology: tpu7x:2x2x1
jax: 0.10.0
libtpu: 0.0.40
codegen_flags: <defaults>
</compile_context>

<pallas_src>
import functools

import jax
import jax.numpy as jnp
from jax.experimental import pallas as pl
from jax.experimental.pallas import tpu as pltpu


# ----------------------------- in-kernel helpers -----------------------------

def _layernorm(x, gamma, beta, eps):
    mu = jnp.mean(x, axis=-1, keepdims=True)
    var = jnp.mean((x - mu) ** 2, axis=-1, keepdims=True)
    return (x - mu) * jax.lax.rsqrt(var + eps) * gamma + beta


# ----------------------- single-buffer capability probe -----------------------

_BUFFERED_WEIGHTS_OK = None


def _single_buffer_supported():
    """Probe (once) whether pipeline_mode=pl.Buffered(1) works on this JAX."""
    global _BUFFERED_WEIGHTS_OK
    if _BUFFERED_WEIGHTS_OK is None:
        ok = False
        if hasattr(pl, "Buffered"):
            try:
                const_spec = pl.BlockSpec((8, 128), lambda i: (0, 0),
                                          pipeline_mode=pl.Buffered(1))

                def _probe(x_ref, o_ref):
                    o_ref[...] = x_ref[...] + 1.0

                y = pl.pallas_call(
                    _probe,
                    grid=(2,),
                    in_specs=[const_spec],
                    out_specs=pl.BlockSpec((8, 128), lambda i: (i, 0)),
                    out_shape=jax.ShapeDtypeStruct((16, 128), jnp.float32),
                )(jnp.zeros((8, 128), jnp.float32))
                jax.block_until_ready(y)
                ok = True
            except Exception:
                ok = False
        _BUFFERED_WEIGHTS_OK = ok
    return _BUFFERED_WEIGHTS_OK


def _const_spec(a):
    """Full-array block for weights/biases (same block every grid step).

    Single-buffered when supported: the block index never changes, so double
    buffering would only waste VMEM.
    """
    n = a.ndim
    idx = lambda *_: (0,) * n
    if _single_buffer_supported():
        return pl.BlockSpec(a.shape, idx, pipeline_mode=pl.Buffered(1))
    # TODO(synk): when Buffered(1) is unsupported, fall back to
    # memory_space=pl.ANY + one manual sync copy to avoid double-buffering
    # large constant weight blocks.
    return pl.BlockSpec(a.shape, idx)


# ------------------------------ VMEM budgeting --------------------------------

def _vmem_limit_bytes(const_args, tiled_block_bytes, temp_bytes):
    """Device-aware scoped-VMEM request (never above physical capacity)."""
    try:
        cap = int(pltpu.get_tpu_info().vmem_capacity_bytes)
    except Exception:
        cap = 64 << 20                      # conservative: v7x per-TC VMEM
    const_mult = 1 if _single_buffer_supported() else 2
    const_bytes = sum(int(a.size) * a.dtype.itemsize for a in const_args)
    need = int(1.25 * (const_mult * const_bytes
                       + 2 * int(tiled_block_bytes)      # double-buffered tiles
                       + int(temp_bytes)))
    ceiling = max(cap - (8 << 20), 16 << 20)              # leave DMA headroom
    return min(max(32 << 20, need), ceiling)


def _choose_seq_tile(S, target=256):
    """Largest divisor of S that is <= target and a multiple of 8 (or S)."""
    if S <= target:
        return S
    for t in range(target, 7, -1):
        if S % t == 0 and t % 8 == 0:
            return t
    return S


# --------------------------------- kernels ------------------------------------

def ln_qkv_kernel(x_ref, g_ref, b_ref, wqkv_ref, bqkv_ref, qkv_ref, *, eps):
    """LN1 + fused QKV projection for one (batch, seq-tile) block."""
    x = x_ref[0].astype(jnp.float32)                       # (Ts, D)
    h = _layernorm(x, g_ref[0], b_ref[0], eps).astype(jnp.bfloat16)
    y = jnp.dot(h, wqkv_ref[...],
                preferred_element_type=jnp.float32) + bqkv_ref[0]   # (Ts, 3D)
    qkv_ref[0] = y.astype(qkv_ref.dtype)


def attn_core_kernel(q_ref, k_ref, v_ref, ctx_ref, *maybe_attn,
                     scale, seq_tile, output_attentions):
    """Masked softmax attention for one (batch, query-tile) block."""
    attn_ref = maybe_attn[0] if output_attentions else None

    q = q_ref[0]                                           # (H, Tq, hd) bf16
    k = k_ref[0]                                           # (H, S,  hd) bf16
    v = v_ref[0]                                           # (H, S,  hd) bf16
    _, Tq, _ = q.shape
    S = k.shape[1]

    scores = jnp.einsum('hqd,hkd->hqk', q, k,
                        preferred_element_type=jnp.float32) * scale  # (H,Tq,S)

    # Causal mask from ONE (Tq, S) comparison, broadcast over heads.
    q0 = pl.program_id(1) * seq_tile
    rows = jax.lax.broadcasted_iota(jnp.int32, (Tq, S), 0) + q0
    cols = jax.lax.broadcasted_iota(jnp.int32, (Tq, S), 1)
    mask = (cols <= rows)[None]                            # (1, Tq, S)
    scores = jnp.where(mask, scores, jnp.float32(-10000.0))

    scores = scores - jnp.max(scores, axis=-1, keepdims=True)
    p = jnp.exp(scores)
    # NOTE: approx reciprocal -> inference-grade softmax normalization.
    p = p * pl.reciprocal(jnp.sum(p, axis=-1, keepdims=True), approx=True)

    if output_attentions:
        attn_ref[0] = p.astype(attn_ref.dtype)             # one bulk store

    ctx = jnp.einsum('hqk,hkd->hqd', p.astype(jnp.bfloat16), v,
                     preferred_element_type=jnp.float32)   # (H, Tq, hd)
    ctx_ref[0] = ctx.astype(ctx_ref.dtype)


def proj_mlp_kernel(ctx_ref, x_ref, wproj_ref, bproj_ref, ln2_g, ln2_b,
                    w1_ref, b1_ref, w2_ref, b2_ref, *rest,
                    eps, apply_final_ln):
    """Output projection + residual + LN2 + MLP + residual (+ final LN)."""
    rest = list(rest)
    if apply_final_ln:
        lnf_g = rest.pop(0)
        lnf_b = rest.pop(0)
    o_ref = rest.pop(0)

    resid = x_ref[0].astype(jnp.float32)                   # (Ts, D)
    ctx = ctx_ref[0]                                       # (Ts, D) bf16 (merged heads)

    attn_out = jnp.dot(ctx, wproj_ref[...],
                       preferred_element_type=jnp.float32) + bproj_ref[0]
    x = attn_out + resid

    resid = x
    h = _layernorm(x, ln2_g[0], ln2_b[0], eps).astype(jnp.bfloat16)
    h = jnp.dot(h, w1_ref[...], preferred_element_type=jnp.float32) + b1_ref[0]
    h = jax.nn.gelu(h, approximate=True)                   # GPT2 "gelu_new"
    h = jnp.dot(h.astype(jnp.bfloat16), w2_ref[...],
                preferred_element_type=jnp.float32) + b2_ref[0]
    y = h + resid

    if apply_final_ln:                                     # fused final LayerNorm
        y = _layernorm(y, lnf_g[0], lnf_b[0], eps)
    o_ref[0] = y.astype(o_ref.dtype)


def final_ln_kernel(x_ref, g_ref, b_ref, o_ref, *, eps):
    o_ref[0] = _layernorm(x_ref[0].astype(jnp.float32), g_ref[0], b_ref[0],
                          eps).astype(o_ref.dtype)


# ------------------------------ python wrappers -------------------------------

def run_ln_qkv(x, g, b, wqkv, bqkv, *, eps, seq_tile):
    B, S, D = x.shape
    D3 = wqkv.shape[1]
    nq = S // seq_tile
    consts = (g, b, wqkv, bqkv)
    tiled = seq_tile * (D * x.dtype.itemsize + D3 * 2)
    temps = 4 * seq_tile * (3 * D + 2 * D3)
    return pl.pallas_call(
        functools.partial(ln_qkv_kernel, eps=eps),
        grid=(B, nq),
        in_specs=[pl.BlockSpec((1, seq_tile, D), lambda bi, qi: (bi, qi, 0))]
                 + [_const_spec(a) for a in consts],
        out_specs=pl.BlockSpec((1, seq_tile, D3), lambda bi, qi: (bi, qi, 0)),
        out_shape=jax.ShapeDtypeStruct((B, S, D3), jnp.bfloat16),
        compiler_params=pltpu.CompilerParams(
            dimension_semantics=("parallel", "parallel"),
            vmem_limit_bytes=_vmem_limit_bytes(consts, tiled, temps)),
    )(x, g, b, wqkv, bqkv)


def run_attn_core(q, k, v, *, seq_tile, output_attentions=False):
    B, H, S, hd = q.shape
    nq = S // seq_tile
    scale = 1.0 / float(hd) ** 0.5

    in_specs = [
        pl.BlockSpec((1, H, seq_tile, hd), lambda bi, qi: (bi, 0, qi, 0)),
        pl.BlockSpec((1, H, S, hd), lambda bi, qi: (bi, 0, 0, 0)),
        pl.BlockSpec((1, H, S, hd), lambda bi, qi: (bi, 0, 0, 0)),
    ]
    out_shape = [jax.ShapeDtypeStruct((B, H, S, hd), jnp.bfloat16)]
    out_specs = [pl.BlockSpec((1, H, seq_tile, hd),
                              lambda bi, qi: (bi, 0, qi, 0))]
    if output_attentions:
        out_shape.append(jax.ShapeDtypeStruct((B, H, S, S), jnp.float32))
        out_specs.append(pl.BlockSpec((1, H, seq_tile, S),
                                      lambda bi, qi: (bi, 0, qi, 0)))

    tiled = (H * seq_tile * hd * 2        # q tile
             + 2 * H * S * hd * 2         # k, v (whole sequence, bf16)
             + H * seq_tile * hd * 2      # ctx tile
             + (H * seq_tile * S * 4 if output_attentions else 0))
    temps = 3 * H * seq_tile * S * 4 + 2 * seq_tile * S * 4

    outs = pl.pallas_call(
        functools.partial(attn_core_kernel, scale=scale, seq_tile=seq_tile,
                          output_attentions=output_attentions),
        grid=(B, nq),
        in_specs=in_specs,
        out_specs=tuple(out_specs),
        out_shape=tuple(out_shape),
        compiler_params=pltpu.CompilerParams(
            dimension_semantics=("parallel", "parallel"),
            vmem_limit_bytes=_vmem_limit_bytes((), tiled, temps)),
    )(q, k, v)
    return outs[0], (outs[1] if output_attentions else None)


def run_proj_mlp(ctx_m, x, bp, *, eps, seq_tile, final_ln, out_dtype):
    B, S, D = x.shape
    inner = bp["w1"].shape[1]
    nq = S // seq_tile
    apply_final_ln = final_ln is not None

    consts = [bp["wproj"], bp["bproj"], bp["ln2_g"], bp["ln2_b"],
              bp["w1"], bp["b1"], bp["w2"], bp["b2"]]
    if apply_final_ln:
        consts += [final_ln[0], final_ln[1]]

    in_specs = [pl.BlockSpec((1, seq_tile, D), lambda bi, qi: (bi, qi, 0)),
                pl.BlockSpec((1, seq_tile, D), lambda bi, qi: (bi, qi, 0))]
    in_specs += [_const_spec(a) for a in consts]

    tiled = seq_tile * D * (ctx_m.dtype.itemsize + x.dtype.itemsize
                            + jnp.dtype(out_dtype).itemsize)
    temps = 4 * seq_tile * (4 * D + 2 * inner)

    kernel = functools.partial(proj_mlp_kernel, eps=eps,
                               apply_final_ln=apply_final_ln)
    return pl.pallas_call(
        kernel,
        grid=(B, nq),
        in_specs=in_specs,
        out_specs=pl.BlockSpec((1, seq_tile, D), lambda bi, qi: (bi, qi, 0)),
        out_shape=jax.ShapeDtypeStruct((B, S, D), out_dtype),
        compiler_params=pltpu.CompilerParams(
            dimension_semantics=("parallel", "parallel"),
            vmem_limit_bytes=_vmem_limit_bytes(consts, tiled, temps)),
    )(ctx_m, x, *consts)


def run_final_ln(x, g, b, *, eps):
    B, S, D = x.shape
    return pl.pallas_call(
        functools.partial(final_ln_kernel, eps=eps),
        grid=(B,),
        in_specs=[pl.BlockSpec((1, S, D), lambda i: (i, 0, 0)),
                  _const_spec(g), _const_spec(b)],
        out_specs=pl.BlockSpec((1, S, D), lambda i: (i, 0, 0)),
        out_shape=jax.ShapeDtypeStruct((B, S, D), jnp.float32),
        compiler_params=pltpu.CompilerParams(dimension_semantics=("parallel",)),
    )(x, g, b)


# --------------------- param building / kernel-side layout --------------------

def make_params(key, *, n_layer, embd_dim, inner_dim):
    """Standard (torch-equivalent) f32 parameters: y = x @ W + b."""
    def init(k, shape):
        return (0.02 * jax.random.normal(k, shape)).astype(jnp.float32)

    blocks = []
    keys = jax.random.split(key, n_layer + 1)
    for li in range(n_layer):
        ks = jax.random.split(keys[li], 4)
        blocks.append(dict(
            ln1_g=jnp.ones((1, embd_dim), jnp.float32),
            ln1_b=jnp.zeros((1, embd_dim), jnp.float32),
            wqkv=init(ks[0], (embd_dim, 3 * embd_dim)),
            bqkv=jnp.zeros((1, 3 * embd_dim), jnp.float32),
            wproj=init(ks[1], (embd_dim, embd_dim)),
            bproj=jnp.zeros((1, embd_dim), jnp.float32),
            ln2_g=jnp.ones((1, embd_dim), jnp.float32),
            ln2_b=jnp.zeros((1, embd_dim), jnp.float32),
            w1=init(ks[2], (embd_dim, inner_dim)),
            b1=jnp.zeros((1, inner_dim), jnp.float32),
            w2=init(ks[3], (inner_dim, embd_dim)),
            b2=jnp.zeros((1, embd_dim), jnp.float32),
        ))
    return dict(
        blocks=blocks,
        ln_g=jnp.ones((1, embd_dim), jnp.float32),
        ln_b=jnp.zeros((1, embd_dim), jnp.float32),
    )


def convert_params_for_kernel(params):
    """bf16 matmul weights (packed QKV kept as (D, 3D)); LN/bias stay f32."""
    def conv_block(p):
        return dict(
            ln1_g=p["ln1_g"], ln1_b=p["ln1_b"],
            wqkv=p["wqkv"].astype(jnp.bfloat16), bqkv=p["bqkv"],
            wproj=p["wproj"].astype(jnp.bfloat16), bproj=p["bproj"],
            ln2_g=p["ln2_g"], ln2_b=p["ln2_b"],
            w1=p["w1"].astype(jnp.bfloat16), b1=p["b1"],
            w2=p["w2"].astype(jnp.bfloat16), b2=p["b2"],
        )
    return dict(blocks=[conv_block(bp) for bp in params["blocks"]],
                ln_g=params["ln_g"], ln_b=params["ln_b"])


# --------------------------------- forward ------------------------------------

def gpt2_model_forward(input_embds, params, *, num_heads, eps,
                       output_attentions=True):
    """GPT2Model.forward with input_embds (inference: all dropouts identity)."""
    # TODO(synk): input_ids / embedding-table path not implemented (reference
    # uses flax-style nn.Embed inside a torch module, which is broken upstream).
    # TODO(synk): attn_mask / head_mask / past_key_values / use_cache paths not
    # implemented (defaults None/False in the reference forward).
    kparams = convert_params_for_kernel(params)
    x = input_embds
    B, S, D = x.shape
    hd = D // num_heads
    seq_tile = _choose_seq_tile(S)

    blocks = kparams["blocks"]
    n = len(blocks)
    attn_weights_list = []

    if n == 0:
        x = run_final_ln(x, kparams["ln_g"], kparams["ln_b"], eps=eps)

    for li, bp in enumerate(blocks):
        last = (li == n - 1)

        # 1) LN1 + fused QKV projection (Pallas).
        qkv = run_ln_qkv(x, bp["ln1_g"], bp["ln1_b"], bp["wqkv"], bp["bqkv"],
                         eps=eps, seq_tile=seq_tile)

        # split_heads — pure layout plumbing on small bf16 arrays (XLA side).
        qkv = qkv.reshape(B, S, 3, num_heads, hd)
        q = jnp.transpose(qkv[:, :, 0], (0, 2, 1, 3))   # (B, H, S, hd)
        k = jnp.transpose(qkv[:, :, 1], (0, 2, 1, 3))
        v = jnp.transpose(qkv[:, :, 2], (0, 2, 1, 3))

        # 2) Masked softmax attention core (Pallas, query-tiled).
        ctx, probs = run_attn_core(q, k, v, seq_tile=seq_tile,
                                   output_attentions=output_attentions)

        # merge_heads — layout plumbing (XLA side).
        ctx_m = jnp.transpose(ctx, (0, 2, 1, 3)).reshape(B, S, D)

        # 3) Output projection + residual + LN2 + MLP + residual (+ final LN).
        fused_ln = (kparams["ln_g"], kparams["ln_b"]) if last else None
        x = run_proj_mlp(ctx_m, x, bp, eps=eps, seq_tile=seq_tile,
                         final_ln=fused_ln,
                         out_dtype=jnp.float32 if last else jnp.bfloat16)

        attn_weights_list.append(probs)

    return {"last_hidden_state": x,
            "past_key_values": None,
            "attn_weights_list": attn_weights_list}


# ------------------------------------ main ------------------------------------

if __name__ == "__main__":
    # small GPT2 config: batch=2, seq=8, embd_dim=32, n_head=2, n_layer=2
    B, S, D = 2, 8, 32
    N_HEAD, N_LAYER = 2, 2
    INNER = 4 * D
    EPS = 1e-5

    key = jax.random.PRNGKey(0)
    k_param, k_x = jax.random.split(key)
    params = make_params(k_param, n_layer=N_LAYER, embd_dim=D, inner_dim=INNER)
    input_embds = jax.random.normal(k_x, (B, S, D), dtype=jnp.float32)

    out = gpt2_model_forward(input_embds, params, num_heads=N_HEAD, eps=EPS,
                             output_attentions=True)
    jax.block_until_ready(out["last_hidden_state"])
    for aw in out["attn_weights_list"]:
        jax.block_until_ready(aw)

    assert out["last_hidden_state"].shape == (B, S, D)
    assert out["last_hidden_state"].dtype == jnp.float32
    assert out["attn_weights_list"][0].shape == (B, N_HEAD, S, S)
    assert bool(jnp.all(jnp.isfinite(out["last_hidden_state"])))

    probs = out["attn_weights_list"][0].astype(jnp.float32)
    # sanity: rows are (approximately) probability distributions
    row_sums = jnp.sum(probs, axis=-1)
    assert bool(jnp.all(jnp.abs(row_sums - 1.0) < 1e-2))
    # sanity: causal mask — strictly-upper-triangular probabilities are ~0
    upper = jnp.triu(jnp.ones((S, S), jnp.float32), k=1).astype(bool)
    assert bool(jnp.all(jnp.where(upper[None, None], probs, 0.0) < 1e-6))

    print("KERNEL_OK")
</pallas_src>

<mosaic_0001>
module attributes {stable_mosaic.version = 11 : i64} {
  func.func @_probe(%arg0: i32, %arg1: memref<8x128xf32, #tpu.memory_space<vmem>>, %arg2: memref<8x128xf32, #tpu.memory_space<vmem>>) attributes {dimension_semantics = [#tpu.dimension_semantics<arbitrary>], iteration_bounds = array<i64: 2>, scalar_prefetch = 0 : i64, scratch_operands = 0 : i64, tpu.core_type = #tpu.core_type<tc>, window_params = [{pipeline_mode = #tpu.pipeline_mode<synchronous>, transform_indices = @transform_0, window_bounds = array<i64: 8, 128>}, {transform_indices = @transform_1, window_bounds = array<i64: 8, 128>}]} {
    %c0 = arith.constant 0 : index
    %c0_0 = arith.constant 0 : index
    %0 = vector.load %arg1[%c0, %c0_0] : memref<8x128xf32, #tpu.memory_space<vmem>>, vector<8x128xf32>
    %cst = arith.constant 1.000000e+00 : f32
    %1 = vector.broadcast %cst : f32 to vector<8x128xf32>
    %2 = arith.addf %0, %1 : vector<8x128xf32>
    %c0_1 = arith.constant 0 : index
    %c0_2 = arith.constant 0 : index
    %3 = vector.load %arg2[%c0_1, %c0_2] : memref<8x128xf32, #tpu.memory_space<vmem>>, vector<8x128xf32>
    tpu.vector_store %arg2[%c0_1, %c0_2], %2 {strides = array<i32>} : memref<8x128xf32, #tpu.memory_space<vmem>>, vector<8x128xf32>,
    return
  }
  func.func @transform_0(%arg0: i32) -> (i32, i32) {
    %c0_i32 = arith.constant 0 : i32
    %c0_i32_0 = arith.constant 0 : i32
    %c0_i32_1 = arith.constant 0 : i32
    return %c0_i32, %c0_i32_0 : i32, i32
  }
  func.func @transform_1(%arg0: i32) -> (i32, i32) {
    %c0_i32 = arith.constant 0 : i32
    %c0_i32_0 = arith.constant 0 : i32
    return %arg0, %c0_i32 : i32, i32
  }
}

module attributes {stable_mosaic.version = 11 : i64} {
  func.func @ln_qkv_kernel(%arg0: i32, %arg1: i32, %arg2: memref<1x8x32xf32, #tpu.memory_space<vmem>>, %arg3: memref<1x32xf32, #tpu.memory_space<vmem>>, %arg4: memref<1x32xf32, #tpu.memory_space<vmem>>, %arg5: memref<32x96xbf16, #tpu.memory_space<vmem>>, %arg6: memref<1x96xf32, #tpu.memory_space<vmem>>, %arg7: memref<1x8x96xbf16, #tpu.memory_space<vmem>>) attributes {dimension_semantics = [#tpu.dimension_semantics<parallel>, #tpu.dimension_semantics<parallel>], iteration_bounds = array<i64: 2, 1>, scalar_prefetch = 0 : i64, scratch_operands = 0 : i64, tpu.core_type = #tpu.core_type<tc>, window_params = [{transform_indices = @transform_0, window_bounds = array<i64: 1, 8, 32>}, {pipeline_mode = #tpu.pipeline_mode<synchronous>, transform_indices = @transform_1, window_bounds = array<i64: 1, 32>}, {pipeline_mode = #tpu.pipeline_mode<synchronous>, transform_indices = @transform_2, window_bounds = array<i64: 1, 32>}, {pipeline_mode = #tpu.pipeline_mode<synchronous>, transform_indices = @transform_3, window_bounds = array<i64: 32, 96>}, {pipeline_mode = #tpu.pipeline_mode<synchronous>, transform_indices = @transform_4, window_bounds = array<i64: 1, 96>}, {transform_indices = @transform_5, window_bounds = array<i64: 1, 8, 96>}]} {
    %c0 = arith.constant 0 : index
    %c0_0 = arith.constant 0 : index
    %c0_1 = arith.constant 0 : index
    %0 = vector.load %arg2[%c0, %c0_0, %c0_1] : memref<1x8x32xf32, #tpu.memory_space<vmem>>, vector<1x8x32xf32>
    %1 = vector.shape_cast %0 : vector<1x8x32xf32> to vector<8x32xf32>
    %c0_2 = arith.constant 0 : index
    %c0_3 = arith.constant 0 : index
    %2 = vector.load %arg3[%c0_2, %c0_3] : memref<1x32xf32, #tpu.memory_space<vmem>>, vector<1x32xf32>
    %3 = vector.shape_cast %2 : vector<1x32xf32> to vector<32xf32>
    %c0_4 = arith.constant 0 : index
    %c0_5 = arith.constant 0 : index
    %4 = vector.load %arg4[%c0_4, %c0_5] : memref<1x32xf32, #tpu.memory_space<vmem>>, vector<1x32xf32>
    %5 = vector.shape_cast %4 : vector<1x32xf32> to vector<32xf32>
    %cst = arith.constant dense<0.000000e+00> : vector<8xf32>
    %6 = vector.multi_reduction <add>, %1, %cst [1] : vector<8x32xf32> to vector<8xf32>
    %7 = vector.shape_cast %6 : vector<8xf32> to vector<8x1xf32>
    %cst_6 = arith.constant 3.200000e+01 : f32
    %8 = vector.broadcast %cst_6 : f32 to vector<8x1xf32>
    %9 = arith.divf %7, %8 : vector<8x1xf32>
    %10 = vector.broadcast %9 : vector<8x1xf32> to vector<8x32xf32>
    %11 = arith.subf %1, %10 : vector<8x32xf32>
    %12 = arith.mulf %11, %11 : vector<8x32xf32>
    %cst_7 = arith.constant dense<0.000000e+00> : vector<8xf32>
    %13 = vector.multi_reduction <add>, %12, %cst_7 [1] : vector<8x32xf32> to vector<8xf32>
    %14 = vector.shape_cast %13 : vector<8xf32> to vector<8x1xf32>
    %cst_8 = arith.constant 3.200000e+01 : f32
    %15 = vector.broadcast %cst_8 : f32 to vector<8x1xf32>
    %16 = arith.divf %14, %15 : vector<8x1xf32>
    %17 = vector.broadcast %9 : vector<8x1xf32> to vector<8x32xf32>
    %18 = arith.subf %1, %17 : vector<8x32xf32>
    %cst_9 = arith.constant 9.99999974E-6 : f32
    %19 = vector.broadcast %cst_9 : f32 to vector<8x1xf32>
    %20 = arith.addf %16, %19 : vector<8x1xf32>
    %21 = math.rsqrt %20 : vector<8x1xf32>
    %22 = vector.broadcast %21 : vector<8x1xf32> to vector<8x32xf32>
    %23 = arith.mulf %18, %22 : vector<8x32xf32>
    %24 = vector.shape_cast %3 : vector<32xf32> to vector<1x32xf32>
    %25 = vector.broadcast %24 : vector<1x32xf32> to vector<8x32xf32>
    %26 = arith.mulf %23, %25 : vector<8x32xf32>
    %27 = vector.shape_cast %5 : vector<32xf32> to vector<1x32xf32>
    %28 = vector.broadcast %27 : vector<1x32xf32> to vector<8x32xf32>
    %29 = arith.addf %26, %28 : vector<8x32xf32>
    %30 = arith.truncf %29 : vector<8x32xf32> to vector<8x32xbf16>
    %c0_10 = arith.constant 0 : index
    %c0_11 = arith.constant 0 : index
    %31 = vector.load %arg5[%c0_10, %c0_11] : memref<32x96xbf16, #tpu.memory_space<vmem>>, vector<32x96xbf16>
    %cst_12 = arith.constant dense<0.000000e+00> : vector<8x96xf32>
    %32 = tpu.matmul %30, %31, %cst_12 {dimension_numbers = #tpu.dot_dimension_numbers<[1], [0], [0], [1], [0, 0, 1, 1], [], []>} : vector<8x32xbf16>, vector<32x96xbf16>, vector<8x96xf32> -> vector<8x96xf32>
    %c0_13 = arith.constant 0 : index
    %c0_14 = arith.constant 0 : index
    %33 = vector.load %arg6[%c0_13, %c0_14] : memref<1x96xf32, #tpu.memory_space<vmem>>, vector<1x96xf32>
    %34 = vector.shape_cast %33 : vector<1x96xf32> to vector<96xf32>
    %35 = vector.shape_cast %34 : vector<96xf32> to vector<1x96xf32>
    %36 = vector.broadcast %35 : vector<1x96xf32> to vector<8x96xf32>
    %37 = arith.addf %32, %36 : vector<8x96xf32>
    %38 = arith.truncf %37 : vector<8x96xf32> to vector<8x96xbf16>
    %c0_15 = arith.constant 0 : index
    %c0_16 = arith.constant 0 : index
    %c0_17 = arith.constant 0 : index
    %39 = vector.load %arg7[%c0_15, %c0_16, %c0_17] : memref<1x8x96xbf16, #tpu.memory_space<vmem>>, vector<1x8x96xbf16>
    %40 = vector.shape_cast %39 : vector<1x8x96xbf16> to vector<8x96xbf16>
    %41 = vector.shape_cast %38 : vector<8x96xbf16> to vector<1x8x96xbf16>
    tpu.vector_store %arg7[%c0_15, %c0_16, %c0_17], %41 {strides = array<i32>} : memref<1x8x96xbf16, #tpu.memory_space<vmem>>, vector<1x8x96xbf16>,
    return
  }
  func.func @transform_0(%arg0: i32, %arg1: i32) -> (i32, i32, i32) {
    %c0_i32 = arith.constant 0 : i32
    %c0_i32_0 = arith.constant 0 : i32
    return %arg0, %arg1, %c0_i32 : i32, i32, i32
  }
  func.func @transform_1(%arg0: i32, %arg1: i32) -> (i32, i32) {
    %c0_i32 = arith.constant 0 : i32
    %c0_i32_0 = arith.constant 0 : i32
    %c0_i32_1 = arith.constant 0 : i32
    return %c0_i32, %c0_i32_0 : i32, i32
  }
  func.func @transform_2(%arg0: i32, %arg1: i32) -> (i32, i32) {
    %c0_i32 = arith.constant 0 : i32
    %c0_i32_0 = arith.constant 0 : i32
    %c0_i32_1 = arith.constant 0 : i32
    return %c0_i32, %c0_i32_0 : i32, i32
  }
  func.func @transform_3(%arg0: i32, %arg1: i32) -> (i32, i32) {
    %c0_i32 = arith.constant 0 : i32
    %c0_i32_0 = arith.constant 0 : i32
    %c0_i32_1 = arith.constant 0 : i32
    return %c0_i32, %c0_i32_0 : i32, i32
  }
  func.func @transform_4(%arg0: i32, %arg1: i32) -> (i32, i32) {
    %c0_i32 = arith.constant 0 : i32
    %c0_i32_0 = arith.constant 0 : i32
    %c0_i32_1 = arith.constant 0 : i32
    return %c0_i32, %c0_i32_0 : i32, i32
  }
  func.func @transform_5(%arg0: i32, %arg1: i32) -> (i32, i32, i32) {
    %c0_i32 = arith.constant 0 : i32
    %c0_i32_0 = arith.constant 0 : i32
    return %arg0, %arg1, %c0_i32 : i32, i32, i32
  }
}

</mosaic_0001>

<llo_original>
// kernel: tpu_custom_call.1
$region0: #{tpu_custom_call.1}
  #allocation0 [shape = 'u32[]', space=smem, size = 0x4, offset = 0x4, fixed_abs, tag = 'smem constant byte address 0x4 - core index']
  #allocation1 [shape = 'u32[144,128]{1,0:T(1,128)}', space=vmem, size = 0x12000, scoped, tag = 'internal scratch']
  %s0 = inlined_call_operand.hbm [shape: f32[8,128], index: 0, kind: input, shape index: {}]
  %s1 = inlined_call_operand.hbm [shape: f32[16,128], index: 1, kind: output, shape index: {}]
  %s2 = sld [smem:[#allocation0]]
  $region41: #{tpu_custom_call.1} parent=0
    _
  %s4 = ssub.s32 1, %s2
  %s5 = scalar_select 0, %s4, %s2
  $region1: #{tpu_custom_call.1} parent=0
    #allocation2 [shape = 'u8[4096]{0}', space=vmem, size = 0x1000, scoped, tag = 'input window, operand 0, single buffered']
    #allocation3 [shape = 's32[2]{0}', space=sflag, size = 0x8, scoped, tag = 'scoped memory for tpu_custom_call.1']
    #allocation4 [shape = 's32[2]{0}', space=sflag, size = 0x8, scoped, tag = 'scoped memory for tpu_custom_call.1']
    #allocation5 [shape = 'u8[8192]{0}', space=vmem, size = 0x2000, scoped, tag = 'output window, operand 0']
    %6 = vsyncpa [#allocation3], 0
    %7 = vsyncpa [#allocation4], 0
    %s8 = scalar_lea.sflag [#allocation4], 1
    %9 = vsyncpa %s8, 0
    loop: start=0, step=1, limit=4
    $region2: #{tpu_custom_call.1} parent=1 // loop_pre_header
      _
    $region3: #{tpu_custom_call.1} parent=1 // loop_header
      %s11 = sphi 0, %s15
      %p12 = scmp.ge.s32.totalorder %s11, 4
      %s19 = sphi 0, %s19
      %s21 = sphi 0, %s19
      %s22 = sphi 0, %s21
      %s36 = sphi 0, %s22
      %s42 = sphi 0, %s44
      %s45 = sphi 0, %s42
      %s46 = sphi 0, %s45
      %s62 = sphi 0, %s46
    $region4: #{tpu_custom_call.1} parent=1 // loop_header_branch
      %14 = sbr.rel (%p12) target = $region8
    $region5: #{tpu_custom_call.1} parent=1 // loop_body
      %s16 = ssub.s32 %s11, 1
      %s17 = ssub.s32 %s11, 2
      %s18 = sadd.s32 %s11, 1
      %s20 = sadd.s32 %s19, 1
      %p23 = scmp.eq.s32.totalorder %s11, 1
      %p24 = scmp.ne.s32.totalorder %s19, %s21
      %p25 = scmp.eq.s32.totalorder %s11, 0
      %p26 = por %p24, %p25
      %p27 = scmp.ne.s32.totalorder %s19, %s21
      %p28 = scmp.eq.s32.totalorder %s16, 1
      %p29 = por %p27, %p28
      %p30 = scmp.ne.s32.totalorder %s21, %s22
      %p31 = scmp.eq.s32.totalorder %s16, 0
      %p32 = por %p30, %p31
      %p33 = scmp.ne.s32.totalorder %s21, %s22
      %p34 = scmp.eq.s32.totalorder %s17, 1
      %p35 = por %p33, %p34
      %p37 = scmp.ne.s32.totalorder %s22, %s36
      %p38 = scmp.eq.s32.totalorder %s17, 0
      %p39 = por %p37, %p38
      %s40 = ssub.s32 %s11, %s18
      %p41 = scmp.eq.s32.totalorder %s40, 0
      %s43 = sadd.s32 %s42, 1
      %s44 = scalar_select %p41, %s42, %s43
      %p47 = pneg %p41
      %p48 = scmp.eq.s32.totalorder %s11, 1
      %p49 = por %p47, %p48
      %p50 = scmp.ne.s32.totalorder %s42, %s45
      %p51 = scmp.eq.s32.totalorder %s11, 0
      %p52 = por %p50, %p51
      %p53 = scmp.ne.s32.totalorder %s42, %s45
      %p54 = scmp.eq.s32.totalorder %s16, 1
      %p55 = por %p53, %p54
      %p56 = scmp.ne.s32.totalorder %s45, %s46
      %p57 = scmp.eq.s32.totalorder %s16, 0
      %p58 = por %p56, %p57
      %p59 = scmp.ne.s32.totalorder %s45, %s46
      %p60 = scmp.eq.s32.totalorder %s17, 1
      %p61 = por %p59, %p60
      %p63 = scmp.ne.s32.totalorder %s46, %s62
      %p64 = scmp.eq.s32.totalorder %s17, 0
      %p65 = por %p63, %p64
      %p66 = scmp.le.s32.totalorder 1, %s11
      %p67 = scmp.lt.s32.totalorder %s11, 3
      %p68 = pnand %p66, %p67
      %p69 = pneg %p68
      // Predicated region
      $region9: #{tpu_custom_call.1} parent=5 // pred_check
        _
      $region10: #{tpu_custom_call.1} parent=5 // pred_check_branch
        %71 = sbr.rel (%p68) target = $region12
      $region11: #{tpu_custom_call.1} parent=5 // pred_region
        %s72 = ssub.s32 %s11, 1
        // Predicated region
        $region13: #{tpu_custom_call.1} parent=11 // pred_check
          %p73 = pneg %p32
        $region14: #{tpu_custom_call.1} parent=11 // pred_check_branch
          %75 = sbr.rel (%p73) target = $region16
        $region15: #{tpu_custom_call.1} parent=11 // pred_region
          %s77 = ssub.s32 128, 128
          %78 = vsyncadd [#allocation3], %s77
          %s80 = sshll.u32 [#allocation2], 4
          %s81 = int_to_ptr.vmem [resolvable:$true] %s80
          %83 = dma.hbm_to_vmem [thread:$0]  %s0, 128, %s81, [#allocation3]
        $region16: #{tpu_custom_call.1} parent=11 // pred_fallthru
          _
      $region12: #{tpu_custom_call.1} parent=5 // pred_fallthru
        _
      %p84 = scmp.lt.s32.totalorder %s11, 2
      // Predicated region
      $region17: #{tpu_custom_call.1} parent=5 // pred_check
        %p85 = pneg %p84
      $region18: #{tpu_custom_call.1} parent=5 // pred_check_branch
        %87 = sbr.rel (%p85) target = $region20
      $region19: #{tpu_custom_call.1} parent=5 // pred_region
        _
      $region20: #{tpu_custom_call.1} parent=5 // pred_fallthru
        _
      %p88 = scmp.le.s32.totalorder 1, %s11
      %p89 = scmp.lt.s32.totalorder %s11, 3
      %p90 = pnand %p88, %p89
      %p91 = pneg %p90
      // Predicated region
      $region21: #{tpu_custom_call.1} parent=5 // pred_check
        _
      $region22: #{tpu_custom_call.1} parent=5 // pred_check_branch
        %93 = sbr.rel (%p90) target = $region24
      $region23: #{tpu_custom_call.1} parent=5 // pred_region
        %s94 = ssub.s32 %s11, 1
        // Predicated region
        $region25: #{tpu_custom_call.1} parent=23 // pred_check
          %p95 = pneg %p32
        $region26: #{tpu_custom_call.1} parent=23 // pred_check_branch
          %97 = sbr.rel (%p95) target = $region28
        $region27: #{tpu_custom_call.1} parent=23 // pred_region
          %98 = dma.done [#allocation3], 128
        $region28: #{tpu_custom_call.1} parent=23 // pred_fallthru
          _
        %p99 = pneg %p32
        %p100 = pneg %p29
        %p101 = pneg %p58
        %p102 = pneg %p55
        %s103 = sand.u32 %s45, 1
        %s104 = scalar_lea.sflag [#allocation4], %s103
        %s105 = sand.u32 %s45, 1
        %s106 = smul.addr %s105, 8
        %s107 = scalar_lea.vmem [#allocation5], %s106
        %v108 = vld [vmem:[#allocation2] sm:$0xff]
        %v109 = vadd.f32 %v108, 1.0
        %110 = vst [vmem:[%s107] sm:$0xff] %v109
        %s111 = sand.u32 %s45, 1
        %s112 = scalar_lea.sflag [#allocation4], %s111
        %s113 = sand.u32 %s45, 1
        %s114 = smul.addr %s113, 8
        %s115 = scalar_lea.vmem [#allocation5], %s114
        // Predicated region
        $region29: #{tpu_custom_call.1} parent=23 // pred_check
          %p116 = pneg %p55
        $region30: #{tpu_custom_call.1} parent=23 // pred_check_branch
          %118 = sbr.rel (%p116) target = $region32
        $region31: #{tpu_custom_call.1} parent=23 // pred_region
          %s120 = ssub.s32 128, 128
          %121 = vsyncadd %s112, %s120
          %s122 = smul.addr %s16, 128
          %s123 = scalar_lea.hbm %s1, %s122
          %s125 = sshll.u32 %s115, 4
          %s126 = int_to_ptr.vmem [resolvable:$true] %s125
          %128 = dma.vmem_to_hbm [thread:$0]  %s126, 128, %s123, %s112
        $region32: #{tpu_custom_call.1} parent=23 // pred_fallthru
          _
      $region24: #{tpu_custom_call.1} parent=5 // pred_fallthru
        _
      %p129 = scmp.le.s32.totalorder 2, %s11
      // Predicated region
      $region33: #{tpu_custom_call.1} parent=5 // pred_check
        %p130 = pneg %p129
      $region34: #{tpu_custom_call.1} parent=5 // pred_check_branch
        %132 = sbr.rel (%p130) target = $region36
      $region35: #{tpu_custom_call.1} parent=5 // pred_region
        %s133 = ssub.s32 %s11, 2
        // Predicated region
        $region37: #{tpu_custom_call.1} parent=35 // pred_check
          %p134 = pneg %p61
        $region38: #{tpu_custom_call.1} parent=35 // pred_check_branch
          %136 = sbr.rel (%p134) target = $region40
        $region39: #{tpu_custom_call.1} parent=35 // pred_region
          %s137 = sand.u32 %s46, 1
          %s138 = scalar_lea.sflag [#allocation4], %s137
          %s139 = sand.u32 %s46, 1
          %s140 = smul.addr %s139, 8
          %s141 = scalar_lea.vmem [#allocation5], %s140
          %142 = dma.done %s138, 128
        $region40: #{tpu_custom_call.1} parent=35 // pred_fallthru
          _
      $region36: #{tpu_custom_call.1} parent=5 // pred_fallthru
        _
    $region6: #{tpu_custom_call.1} parent=1 // loop_footer
      %s15 = sadd.s32 1, %s11
    $region7: #{tpu_custom_call.1} parent=1 // loop_footer_branch
      %10 = sbr.rel target = $region3
    $region8: #{tpu_custom_call.1} parent=1 // loop_exit
      _
    %143 = vsyncpa [#allocation3], 1
    %s144 = scalar_lea.sflag [#allocation3], 1
    %145 = vsyncpa %s144, 1
    %146 = vsyncpa [#allocation4], 1
    %s147 = scalar_lea.sflag [#allocation4], 1
    %148 = vsyncpa %s147, 1

// kernel: tpu_custom_call.1
$region0: #{tpu_custom_call.1}
  #allocation0 [shape = 'u32[]', space=smem, size = 0x4, offset = 0x4, fixed_abs, tag = 'smem constant byte address 0x4 - core index']
  #allocation1 [shape = 'u32[144,128]{1,0:T(1,128)}', space=vmem, size = 0x12000, scoped, tag = 'internal scratch']
  %s0 = inlined_call_operand.hbm [shape: f32[2,8,32], index: 0, kind: input, shape index: {}]
  %s1 = inlined_call_operand.vmem [shape: f32[1,32], index: 1, kind: input, shape index: {}]
  %s2 = inlined_call_operand.vmem [shape: f32[1,32], index: 2, kind: input, shape index: {}]
  %s3 = inlined_call_operand.hbm [shape: bf16[32,96], index: 3, kind: input, shape index: {}]
  %s4 = inlined_call_operand.vmem [shape: f32[1,96], index: 4, kind: input, shape index: {}]
  %s5 = inlined_call_operand.hbm [shape: bf16[2,8,96], index: 5, kind: output, shape index: {}]
  %s6 = sld [smem:[#allocation0]]
  $region61: #{tpu_custom_call.1} parent=0
    _
  %s8 = ssub.s32 1, %s6
  %s9 = scalar_select 0, %s8, %s6
  $region1: #{tpu_custom_call.1} parent=0
    #allocation2 [shape = 'u8[8192]{0}', space=vmem, size = 0x2000, scoped, tag = 'input window, operand 0']
    #allocation3 [shape = 's32[2]{0}', space=sflag, size = 0x8, scoped, tag = 'scoped memory for tpu_custom_call.1']
    #allocation4 [shape = 's32[2]{0}', space=sflag, size = 0x8, scoped, tag = 'scoped memory for tpu_custom_call.1']
    #allocation5 [shape = 'u8[8192]{0}', space=vmem, size = 0x2000, scoped, tag = 'input window, operand 3, single buffered']
    #allocation6 [shape = 's32[1]{0}', space=sflag, size = 0x4, scoped, tag = 'scoped memory for tpu_custom_call.1']
    #allocation7 [shape = 'u8[4096]{0}', space=vmem, size = 0x1000, scoped, tag = 'output window, operand 0']
    %10 = vsyncpa [#allocation3], 0
    %s11 = scalar_lea.sflag [#allocation3], 1
    %12 = vsyncpa %s11, 0
    %13 = vsyncpa [#allocation6], 0
    %14 = vsyncpa [#allocation4], 0
    %s15 = scalar_lea.sflag [#allocation4], 1
    %16 = vsyncpa %s15, 0
    loop: start=0, step=1, limit=4
    $region2: #{tpu_custom_call.1} parent=1 // loop_pre_header
      _
    $region3: #{tpu_custom_call.1} parent=1 // loop_header
      %s18 = sphi 0, %s22
      %p19 = scmp.ge.s32.totalorder %s18, 4
      %s25 = sphi 0, %s37
      %s26 = sphi 0, %s33
      %s27 = sphi 0, %s25
      %s28 = sphi 0, %s26
      %s29 = sphi 0, %s27
      %s30 = sphi 0, %s28
      %s42 = sphi 0, %s44
      %s45 = sphi 0, %s42
      %s46 = sphi 0, %s45
      %s62 = sphi 0, %s46
      %s66 = sphi 0, %s66
      %s68 = sphi 0, %s66
      %s69 = sphi 0, %s68
      %s83 = sphi 0, %s69
      %s87 = sphi 0, %s87
      %s89 = sphi 0, %s87
      %s90 = sphi 0, %s89
      %s104 = sphi 0, %s90
      %s108 = sphi 0, %s108
      %s110 = sphi 0, %s108
      %s111 = sphi 0, %s110
      %s125 = sphi 0, %s111
      %s129 = sphi 0, %s129
      %s131 = sphi 0, %s129
      %s132 = sphi 0, %s131
      %s146 = sphi 0, %s132
      %s154 = sphi 0, %s156
      %s157 = sphi 0, %s154
      %s158 = sphi 0, %s157
      %s174 = sphi 0, %s158
    $region4: #{tpu_custom_call.1} parent=1 // loop_header_branch
      %21 = sbr.rel (%p19) target = $region8
    $region5: #{tpu_custom_call.1} parent=1 // loop_body
      %s23 = ssub.s32 %s18, 1
      %s24 = ssub.s32 %s18, 2
      %s31 = sadd.s32 1, %s26
      %p32 = scmp.ge.s32.totalorder %s31, 1
      %s33 = scalar_select %p32, 0, %s31
      %s34 = sadd.s32 1, %s25
      %s35 = scalar_select %p32, %s34, %s25
      %p36 = scmp.ge.s32.totalorder %s35, 2
      %s37 = scalar_select %p36, 0, %s35
      %s38 = ssub.s32 %s25, %s37
      %s39 = ssub.s32 %s26, %s33
      %s40 = sor.u32 %s38, %s39
      %p41 = scmp.eq.s32.totalorder %s40, 0
      %s43 = sadd.s32 %s42, 1
      %s44 = scalar_select %p41, %s42, %s43
      %p47 = pneg %p41
      %p48 = scmp.eq.s32.totalorder %s18, 1
      %p49 = por %p47, %p48
      %p50 = scmp.ne.s32.totalorder %s42, %s45
      %p51 = scmp.eq.s32.totalorder %s18, 0
      %p52 = por %p50, %p51
      %p53 = scmp.ne.s32.totalorder %s42, %s45
      %p54 = scmp.eq.s32.totalorder %s23, 1
      %p55 = por %p53, %p54
      %p56 = scmp.ne.s32.totalorder %s45, %s46
      %p57 = scmp.eq.s32.totalorder %s23, 0
      %p58 = por %p56, %p57
      %p59 = scmp.ne.s32.totalorder %s45, %s46
      %p60 = scmp.eq.s32.totalorder %s24, 1
      %p61 = por %p59, %p60
      %p63 = scmp.ne.s32.totalorder %s46, %s62
      %p64 = scmp.eq.s32.totalorder %s24, 0
      %p65 = por %p63, %p64
      %s67 = sadd.s32 %s66, 1
      %p70 = scmp.eq.s32.totalorder %s18, 1
      %p71 = scmp.ne.s32.totalorder %s66, %s68
      %p72 = scmp.eq.s32.totalorder %s18, 0
      %p73 = por %p71, %p72
      %p74 = scmp.ne.s32.totalorder %s66, %s68
      %p75 = scmp.eq.s32.totalorder %s23, 1
      %p76 = por %p74, %p75
      %p77 = scmp.ne.s32.totalorder %s68, %s69
      %p78 = scmp.eq.s32.totalorder %s23, 0
      %p79 = por %p77, %p78
      %p80 = scmp.ne.s32.totalorder %s68, %s69
      %p81 = scmp.eq.s32.totalorder %s24, 1
      %p82 = por %p80, %p81
      %p84 = scmp.ne.s32.totalorder %s69, %s83
      %p85 = scmp.eq.s32.totalorder %s24, 0
      %p86 = por %p84, %p85
      %s88 = sadd.s32 %s87, 1
      %p91 = scmp.eq.s32.totalorder %s18, 1
      %p92 = scmp.ne.s32.totalorder %s87, %s89
      %p93 = scmp.eq.s32.totalorder %s18, 0
      %p94 = por %p92, %p93
      %p95 = scmp.ne.s32.totalorder %s87, %s89
      %p96 = scmp.eq.s32.totalorder %s23, 1
      %p97 = por %p95, %p96
      %p98 = scmp.ne.s32.totalorder %s89, %s90
      %p99 = scmp.eq.s32.totalorder %s23, 0
      %p100 = por %p98, %p99
      %p101 = scmp.ne.s32.totalorder %s89, %s90
      %p102 = scmp.eq.s32.totalorder %s24, 1
      %p103 = por %p101, %p102
      %p105 = scmp.ne.s32.totalorder %s90, %s104
      %p106 = scmp.eq.s32.totalorder %s24, 0
      %p107 = por %p105, %p106
      %s109 = sadd.s32 %s108, 1
      %p112 = scmp.eq.s32.totalorder %s18, 1
      %p113 = scmp.ne.s32.totalorder %s108, %s110
      %p114 = scmp.eq.s32.totalorder %s18, 0
      %p115 = por %p113, %p114
      %p116 = scmp.ne.s32.totalorder %s108, %s110
      %p117 = scmp.eq.s32.totalorder %s23, 1
      %p118 = por %p116, %p117
      %p119 = scmp.ne.s32.totalorder %s110, %s111
      %p120 = scmp.eq.s32.totalorder %s23, 0
      %p121 = por %p119, %p120
      %p122 = scmp.ne.s32.totalorder %s110, %s111
      %p123 = scmp.eq.s32.totalorder %s24, 1
      %p124 = por %p122, %p123
      %p126 = scmp.ne.s32.totalorder %s111, %s125
      %p127 = scmp.eq.s32.totalorder %s24, 0
      %p128 = por %p126, %p127
      %s130 = sadd.s32 %s129, 1
      %p133 = scmp.eq.s32.totalorder %s18, 1
      %p134 = scmp.ne.s32.totalorder %s129, %s131
      %p135 = scmp.eq.s32.totalorder %s18, 0
      %p136 = por %p134, %p135
      %p137 = scmp.ne.s32.totalorder %s129, %s131
      %p138 = scmp.eq.s32.totalorder %s23, 1
      %p139 = por %p137, %p138
      %p140 = scmp.ne.s32.totalorder %s131, %s132
      %p141 = scmp.eq.s32.totalorder %s23, 0
      %p142 = por %p140, %p141
      %p143 = scmp.ne.s32.totalorder %s131, %s132
      %p144 = scmp.eq.s32.totalorder %s24, 1
      %p145 = por %p143, %p144
      %p147 = scmp.ne.s32.totalorder %s132, %s146
      %p148 = scmp.eq.s32.totalorder %s24, 0
      %p149 = por %p147, %p148
      %s150 = ssub.s32 %s25, %s37
      %s151 = ssub.s32 %s26, %s33
      %s152 = sor.u32 %s150, %s151
      %p153 = scmp.eq.s32.totalorder %s152, 0
      %s155 = sadd.s32 %s154, 1
      %s156 = scalar_select %p153, %s154, %s155
      %p159 = pneg %p153
      %p160 = scmp.eq.s32.totalorder %s18, 1
      %p161 = por %p159, %p160
      %p162 = scmp.ne.s32.totalorder %s154, %s157
      %p163 = scmp.eq.s32.totalorder %s18, 0
      %p164 = por %p162, %p163
      %p165 = scmp.ne.s32.totalorder %s154, %s157
      %p166 = scmp.eq.s32.totalorder %s23, 1
      %p167 = por %p165, %p166
      %p168 = scmp.ne.s32.totalorder %s157, %s158
      %p169 = scmp.eq.s32.totalorder %s23, 0
      %p170 = por %p168, %p169
      %p171 = scmp.ne.s32.totalorder %s157, %s158
      %p172 = scmp.eq.s32.totalorder %s24, 1
      %p173 = por %p171, %p172
      %p175 = scmp.ne.s32.totalorder %s158, %s174
      %p176 = scmp.eq.s32.totalorder %s24, 0
      %p177 = por %p175, %p176
      %p178 = scmp.le.s32.totalorder 1, %s18
      %p179 = scmp.lt.s32.totalorder %s18, 3
      %p180 = pnand %p178, %p179
      %p181 = pneg %p180
      // Predicated region
      $region9: #{tpu_custom_call.1} parent=5 // pred_check
        _
      $region10: #{tpu_custom_call.1} parent=5 // pred_check_branch
        %183 = sbr.rel (%p180) target = $region12
      $region11: #{tpu_custom_call.1} parent=5 // pred_region
        %s184 = ssub.s32 %s18, 1
        // Predicated region
        $region13: #{tpu_custom_call.1} parent=11 // pred_check
          %p185 = pneg %p79
        $region14: #{tpu_custom_call.1} parent=11 // pred_check_branch
          %187 = sbr.rel (%p185) target = $region16
        $region15: #{tpu_custom_call.1} parent=11 // pred_region
          _
        $region16: #{tpu_custom_call.1} parent=11 // pred_fallthru
          _
        // Predicated region
        $region17: #{tpu_custom_call.1} parent=11 // pred_check
          %p188 = pneg %p100
        $region18: #{tpu_custom_call.1} parent=11 // pred_check_branch
          %190 = sbr.rel (%p188) target = $region20
        $region19: #{tpu_custom_call.1} parent=11 // pred_region
          _
        $region20: #{tpu_custom_call.1} parent=11 // pred_fallthru
          _
        // Predicated region
        $region21: #{tpu_custom_call.1} parent=11 // pred_check
          %p191 = pneg %p121
        $region22: #{tpu_custom_call.1} parent=11 // pred_check_branch
          %193 = sbr.rel (%p191) target = $region24
        $region23: #{tpu_custom_call.1} parent=11 // pred_region
          %s195 = ssub.s32 256, 256
          %196 = vsyncadd [#allocation6], %s195
          %s197 = sshll.u32 [#allocation5], 4
          %s198 = int_to_ptr.vmem [resolvable:$true] %s197
          %203 = dma.hbm_to_vmem [thread:$0]  %s3, 256, %s198, [#allocation6], 64, 64, 4
        $region24: #{tpu_custom_call.1} parent=11 // pred_fallthru
          _
        // Predicated region
        $region25: #{tpu_custom_call.1} parent=11 // pred_check
          %p204 = pneg %p142
        $region26: #{tpu_custom_call.1} parent=11 // pred_check_branch
          %206 = sbr.rel (%p204) target = $region28
        $region27: #{tpu_custom_call.1} parent=11 // pred_region
          _
        $region28: #{tpu_custom_call.1} parent=11 // pred_fallthru
          _
      $region12: #{tpu_custom_call.1} parent=5 // pred_fallthru
        _
      %p207 = scmp.lt.s32.totalorder %s18, 2
      // Predicated region
      $region29: #{tpu_custom_call.1} parent=5 // pred_check
        %p208 = pneg %p207
      $region30: #{tpu_custom_call.1} parent=5 // pred_check_branch
        %210 = sbr.rel (%p208) target = $region32
      $region31: #{tpu_custom_call.1} parent=5 // pred_region
        // Predicated region
        $region33: #{tpu_custom_call.1} parent=31 // pred_check
          %p211 = pneg %p52
        $region34: #{tpu_custom_call.1} parent=31 // pred_check_branch
          %213 = sbr.rel (%p211) target = $region36
        $region35: #{tpu_custom_call.1} parent=31 // pred_region
          %s214 = sand.u32 %s42, 1
          %s215 = scalar_lea.sflag [#allocation3], %s214
          %s216 = sand.u32 %s42, 1
          %s217 = smul.addr %s216, 8
          %s218 = scalar_lea.vmem [#allocation2], %s217
          %s220 = ssub.s32 128, 128
          %221 = vsyncadd %s215, %s220
          %s222 = sadd.s32 %s26, %s25
          %s223 = smul.addr %s222, 128
          %s224 = scalar_lea.hbm %s0, %s223
          %s226 = sshll.u32 %s218, 4
          %s227 = int_to_ptr.vmem [resolvable:$true] %s226
          %229 = dma.hbm_to_vmem [thread:$0]  %s224, 128, %s227, %s215
        $region36: #{tpu_custom_call.1} parent=31 // pred_fallthru
          _
      $region32: #{tpu_custom_call.1} parent=5 // pred_fallthru
        _
      %p230 = scmp.le.s32.totalorder 1, %s18
      %p231 = scmp.lt.s32.totalorder %s18, 3
      %p232 = pnand %p230, %p231
      %p233 = pneg %p232
      // Predicated region
      $region37: #{tpu_custom_call.1} parent=5 // pred_check
        _
      $region38: #{tpu_custom_call.1} parent=5 // pred_check_branch
        %235 = sbr.rel (%p232) target = $region40
      $region39: #{tpu_custom_call.1} parent=5 // pred_region
        %s236 = ssub.s32 %s18, 1
        %s237 = sand.u32 %s45, 1
        %s238 = scalar_lea.sflag [#allocation3], %s237
        %s239 = sand.u32 %s45, 1
        %s240 = smul.addr %s239, 8
        %s241 = scalar_lea.vmem [#allocation2], %s240
        // Predicated region
        $region41: #{tpu_custom_call.1} parent=39 // pred_check
          %p242 = pneg %p58
        $region42: #{tpu_custom_call.1} parent=39 // pred_check_branch
          %244 = sbr.rel (%p242) target = $region44
        $region43: #{tpu_custom_call.1} parent=39 // pred_region
          %245 = dma.done %s238, 128
        $region44: #{tpu_custom_call.1} parent=39 // pred_fallthru
          _
        // Predicated region
        $region45: #{tpu_custom_call.1} parent=39 // pred_check
          %p246 = pneg %p121
        $region46: #{tpu_custom_call.1} parent=39 // pred_check_branch
          %248 = sbr.rel (%p246) target = $region48
        $region47: #{tpu_custom_call.1} parent=39 // pred_region
          %249 = dma.done [#allocation6], 256
        $region48: #{tpu_custom_call.1} parent=39 // pred_fallthru
          _
        %s250 = sand.u32 %s45, 1
        %s251 = scalar_lea.sflag [#allocation3], %s250
        %s252 = sand.u32 %s45, 1
        %s253 = smul.addr %s252, 8
        %s254 = scalar_lea.vmem [#allocation2], %s253
        %p255 = pneg %p58
        %p256 = pneg %p55
        %p257 = pneg %p79
        %p258 = pneg %p76
        %p259 = pneg %p100
        %p260 = pneg %p97
        %p261 = pneg %p121
        %p262 = pneg %p118
        %p263 = pneg %p142
        %p264 = pneg %p139
        %p265 = pneg %p170
        %p266 = pneg %p167
        %s267 = sand.u32 %s157, 1
        %s268 = scalar_lea.sflag [#allocation4], %s267
        %s269 = sand.u32 %s157, 1
        %s270 = smul.addr %s269, 4
        %s271 = scalar_lea.vmem [#allocation7], %s270
        %v273 = vld [vmem:[%s241] sm:$0xff]
        %v274 = vld [vmem:[%s1] sm:$0x1]
        %v275 = vld [vmem:[%s2] sm:$0x1]
        %vm276 = vcmask 261120
        %v277 = vsel %vm276, %v273, 0.0
        %278 = vadd.xlane.f32.xlu0 %v277
        %v279 = vpop.xlane.xlu0 %278
        %v280 = vrcp.pop 32.0
        %v281 = vmul.f32 %v279, %v280
        %v282 = vsub.f32 %v273, %v281
        %v283 = vmul.f32 %v282, %v282
        %v284 = vsel %vm276, %v283, 0.0
        %285 = vadd.xlane.f32.xlu0 %v284
        %v286 = vpop.xlane.xlu0 %285
        %v287 = vmul.f32 %v286, %v280
        %v288 = vadd.f32 %v287, 1e-05
        %v289 = vrsqrt.pop %v288
        %v290 = vmul.f32 %v282, %v289
        %v292 = vlaneseq
        %v293 = vshrl.u32 %v292, 7
        %v294 = vsub.s32 0, %v293
        %v295 = vrot.slane %v274, %v294
        %v297 = vmul.f32 %v290, %v295
        %v299 = vlaneseq
        %v300 = vshrl.u32 %v299, 7
        %v301 = vsub.s32 0, %v300
        %v302 = vrot.slane %v275, %v301
        %v304 = vadd.f32 %v297, %v302
        %v305 = vpack.c.bf16 %v304, %v304
        %v306 = vld [vmem:[#allocation5] sm:$0xf]
        %v307 = vld [vmem:[#allocation5 + $0x4] sm:$0xf]
        %v308 = vld [vmem:[#allocation5 + $0x8] sm:$0xf]
        %v309 = vld [vmem:[#allocation5 + $0xc] sm:$0xf]
        %v310 = vld [vmem:[%s4] sm:$0x1]
        %v312 = vlaneseq
        %v313 = vshrl.u32 %v312, 7
        %v314 = vsub.s32 0, %v313
        %v315 = vrot.slane %v310, %v314
        %v321 = vunpack.c.l.b16 %v306
        %v322 = vunpack.c.l.b16 %v307
        %v323 = vunpack.c.l.b16 %v308
        %v324 = vunpack.c.l.b16 %v309
        %v325 = vpack.c.b16 %v322, %v321
        %v326 = vpack.c.b16 %v324, %v323
        %v330 = vsel %vm276, %v305, 0
        %332 = vmatprep.subr.bf16.mxu0 0
        %333 = vmatpush1.bf16.msra.mxu0 %v325
        %334 = vmatprep.subr.bf16.mxu0 0
        %335 = vmatpush1.bf16.msra.mxu0 %v326
        %336 = vmatprep.subr.bf16.mxu0 0
        %337 = vmatpush1.bf16.msra.mxu0 0
        %338 = vmatprep.subr.bf16.mxu0 0
        %339 = vmatpush1.bf16.msra.mxu0 0
        %340 = vmatprep.subr.bf16.mxu0 0
        %341 = vmatpush1.bf16.msra.mxu0 0
        %342 = vmatprep.subr.bf16.mxu0 0
        %343 = vmatpush1.bf16.msra.mxu0 0
        %344 = vmatprep.subr.bf16.mxu0 0
        %345 = vmatpush1.bf16.msra.mxu0 0
        %346 = vmatprep.subr.bf16.mxu0 0
        %347 = vmatpush1.bf16.msra.mxu0 0
        %348 = vmatprep.subr.bf16.mxu0 0
        %349 = vmatpush1.bf16.msra.mxu0 0
        %350 = vmatprep.subr.bf16.mxu0 0
        %351 = vmatpush1.bf16.msra.mxu0 0
        %352 = vmatprep.subr.bf16.mxu0 0
        %353 = vmatpush1.bf16.msra.mxu0 0
        %354 = vmatprep.subr.bf16.mxu0 0
        %355 = vmatpush1.bf16.msra.mxu0 0
        %356 = vmatprep.subr.bf16.mxu0 0
        %357 = vmatpush1.bf16.msra.mxu0 0
        %358 = vmatprep.subr.bf16.mxu0 0
        %359 = vmatpush1.bf16.msra.mxu0 0
        %360 = vmatprep.subr.bf16.mxu0 0
        %361 = vmatpush1.bf16.msra.mxu0 0
        %362 = vmatprep.subr.bf16.mxu0 0
        %363 = vmatpush1.bf16.msra.mxu0 0
        %364 = vmatprep.mubr.bf16.mxu0 0
        %365 = vmatmul.mubr.bf16.gmra.mrb[0].mxu0 %v330
        %v366 = vpop.f32.mrb[0].mxu0
        %v367 = vadd.f32 %v315, %v366
        %v368 = vpop.f32.mrb[0].mxu0
        %v369 = vpop.f32.mrb[0].mxu0
        %v370 = vpop.f32.mrb[0].mxu0
        %371 = vdwg.mxu0
        %v372 = vpack.c.bf16 %v367, %v367
        %vm373 = vcmask 781312
        %374 = vst.msk [vmem:[%s271] sm:$0xf] %vm373, %v372
        %s375 = sand.u32 %s157, 1
        %s376 = scalar_lea.sflag [#allocation4], %s375
        %s377 = sand.u32 %s157, 1
        %s378 = smul.addr %s377, 4
        %s379 = scalar_lea.vmem [#allocation7], %s378
        // Predicated region
        $region49: #{tpu_custom_call.1} parent=39 // pred_check
          %p380 = pneg %p167
        $region50: #{tpu_custom_call.1} parent=39 // pred_check_branch
          %382 = sbr.rel (%p380) target = $region52
        $region51: #{tpu_custom_call.1} parent=39 // pred_region
          %s384 = ssub.s32 64, 64
          %385 = vsyncadd %s376, %s384
          %s386 = sadd.s32 %s28, %s27
          %s387 = smul.addr %s386, 64
          %s388 = scalar_lea.hbm %s5, %s387
          %s390 = sshll.u32 %s379, 4
          %s391 = int_to_ptr.vmem [resolvable:$true] %s390
          %393 = dma.vmem_to_hbm [thread:$0]  %s391, 64, %s388, %s376
        $region52: #{tpu_custom_call.1} parent=39 // pred_fallthru
          _
      $region40: #{tpu_custom_call.1} parent=5 // pred_fallthru
        _
      %p394 = scmp.le.s32.totalorder 2, %s18
      // Predicated region
      $region53: #{tpu_custom_call.1} parent=5 // pred_check
        %p395 = pneg %p394
      $region54: #{tpu_custom_call.1} parent=5 // pred_check_branch
        %397 = sbr.rel (%p395) target = $region56
      $region55: #{tpu_custom_call.1} parent=5 // pred_region
        %s398 = ssub.s32 %s18, 2
        // Predicated region
        $region57: #{tpu_custom_call.1} parent=55 // pred_check
          %p399 = pneg %p173
        $region58: #{tpu_custom_call.1} parent=55 // pred_check_branch
          %401 = sbr.rel (%p399) target = $region60
        $region59: #{tpu_custom_call.1} parent=55 // pred_region
          %s402 = sand.u32 %s158, 1
          %s403 = scalar_lea.sflag [#allocation4], %s402
          %s404 = sand.u32 %s158, 1
          %s405 = smul.addr %s404, 4
          %s406 = scalar_lea.vmem [#allocation7], %s405
          %407 = dma.done %s403, 64
        $region60: #{tpu_custom_call.1} parent=55 // pred_fallthru
          _
      $region56: #{tpu_custom_call.1} parent=5 // pred_fallthru
        _
    $region6: #{tpu_custom_call.1} parent=1 // loop_footer
      %s22 = sadd.s32 1, %s18
    $region7: #{tpu_custom_call.1} parent=1 // loop_footer_branch
      %17 = sbr.rel target = $region3
    $region8: #{tpu_custom_call.1} parent=1 // loop_exit
      _
    %408 = vsyncpa [#allocation3], 1
    %s409 = scalar_lea.sflag [#allocation3], 1
    %410 = vsyncpa %s409, 1
    %411 = vsyncpa [#allocation6], 1
    %412 = vsyncpa [#allocation4], 1
    %s413 = scalar_lea.sflag [#allocation4], 1
    %414 = vsyncpa %s413, 1

</llo_original>
